<compile_context>
chip_gen: v7x
topology: tpu7x:2x2x1
jax: 0.10.0
libtpu: 0.0.40
codegen_flags: <defaults>
</compile_context>

<pallas_src>
import functools

import numpy as np

import jax
import jax.numpy as jnp
from jax import lax
from jax.experimental import pallas as pl
from jax.experimental.pallas import tpu as pltpu

LANES = 128        # lane width
SUBLANES = 8       # f32 sublane tile
DEFAULT_BR = 512   # rows (of 128 samples) per grid step; multiple of 8


def _num_core_chunks():
    """2 on dual-TensorCore chips (v7x, v4/v5p megacore), else 1."""
    try:
        kind = jax.devices()[0].device_kind.lower()
    except Exception:
        return 1
    if "v7" in kind or "v4" in kind or "v5p" in kind:
        return 2
    return 1


def _focal_sums_kernel(x_ref, t_ref, w_ref, out_ref, *, n, br, bpc,
                       delta_f, gamma_f, eps):
    chunk = pl.program_id(0)
    blk = pl.program_id(1)

    @pl.when(blk == 0)
    def _():
        out_ref[...] = jnp.zeros_like(out_ref)

    # Deinterleave on the idle MXU: d[r, l] = x[r, 2l+1] - x[r, 2l]
    # (logit difference of sample row0*128 + r*128 + l).
    d_raw = jnp.dot(x_ref[...], w_ref[...], preferred_element_type=jnp.float32)
    t = t_ref[...]                                   # int32 labels

    def psum(v):
        # Reduce only the leading (sublane-group) axis -> (8, 128) slab.
        return jnp.sum(v.reshape(br // SUBLANES, SUBLANES, LANES), axis=0)

    def accumulate(d, tn, tp):
        # 2-class softmax == sigmoid of the logit difference; single exp.
        e = jnp.exp(-jnp.abs(d))
        s = 1.0 + e
        inv = pl.reciprocal(s, approx=True)
        inv = inv * (2.0 - s * inv)        # one Newton step (VPU only, ~f32 acc)
        p_small = e * inv
        p0 = jnp.where(d >= 0.0, p_small, inv)
        p1 = 1.0 - p0

        # One log per element: back/fore CE are mutually exclusive on t.
        pc = jnp.where(tp > 0.5, p1, p0)
        pcc = jnp.clip(pc, eps, 1.0 - eps)           # matches torch.clamp
        one_m = 1.0 - pcc
        if gamma_f == 0.5:                           # default call — sqrt
            mod = jnp.sqrt(one_m)
        elif gamma_f == 1.0:
            mod = one_m
        elif gamma_f == 2.0:
            mod = one_m * one_m
        elif gamma_f == 0.0:
            mod = jnp.ones_like(one_m)
        else:
            mod = jnp.power(one_m, gamma_f)
        coef = delta_f * tp + (1.0 - delta_f) * (mod * tn)
        fe = coef * (-jnp.log(pcc))

        out_ref[0] = out_ref[0] + psum(fe)           # focal numerator
        out_ref[1] = out_ref[1] + psum(tn)           # Σ (1-t)
        out_ref[2] = out_ref[2] + psum(tn * p0)      # S00
        out_ref[3] = out_ref[3] + psum(tp * p1)      # S11

    row0 = (chunk * bpc + blk) * br
    interior = (row0 + br) * LANES <= n              # block fully inside [0, n)

    @pl.when(interior)
    def _():
        tp = (t != 0).astype(jnp.float32)
        accumulate(d_raw, 1.0 - tp, tp)

    @pl.when(jnp.logical_not(interior))
    def _():
        # Ragged-tail / overhang block: build the validity mask and sanitize d
        # (the partial-block DMA can leave arbitrary bytes in the tail rows).
        ridx = lax.broadcasted_iota(jnp.int32, (br, LANES), 0)
        lidx = lax.broadcasted_iota(jnp.int32, (br, LANES), 1)
        valid = ((row0 + ridx) * LANES + lidx) < n
        tp = jnp.where(valid & (t != 0), 1.0, 0.0)
        tn = jnp.where(valid & (t == 0), 1.0, 0.0)
        accumulate(jnp.where(valid, d_raw, 0.0), tn, tp)


@functools.partial(jax.jit, static_argnums=(2, 3, 4, 5, 6, 7))
def _asym_unified_focal_loss(pred, true, weight, delta_f, gamma_f,
                             delta_t, gamma_t, eps):
    n = pred.shape[0]
    pred = pred.astype(jnp.float32)
    true = true.astype(jnp.int32)

    # Lane/sublane-dense views of the RAW inputs (no derived planes).  When n
    # is a multiple of 8*128 these reshapes are pure bitcasts (zero extra HBM
    # traffic); otherwise a single zero-pad (< 1024 samples) aligns the view.
    # The kernel's validity mask handles everything past n either way.
    pad = (-n) % (SUBLANES * LANES)
    pred_flat = pred.reshape(-1)
    if pad:
        pred_flat = jnp.pad(pred_flat, (0, 2 * pad))
        true = jnp.pad(true, (0, pad))
    rows = (n + pad) // LANES
    pred2 = pred_flat.reshape(rows, 2 * LANES)       # interleaved (x0, x1) pairs
    true2 = true.reshape(rows, LANES)

    br = min(DEFAULT_BR, rows)                       # both multiples of 8
    nblocks = -(-rows // br)
    chunks = max(1, min(_num_core_chunks(), nblocks))
    bpc = -(-nblocks // chunks)

    # Constant +-1 deinterleave matrix: (x @ w)[r, l] = x[r, 2l+1] - x[r, 2l].
    w = np.zeros((2 * LANES, LANES), np.float32)
    lane = np.arange(LANES)
    w[2 * lane, lane] = -1.0
    w[2 * lane + 1, lane] = 1.0
    w = jnp.asarray(w)

    kernel = functools.partial(
        _focal_sums_kernel, n=n, br=br, bpc=bpc,
        delta_f=delta_f, gamma_f=gamma_f, eps=eps)

    last = nblocks - 1
    data_map = lambda c, i: (jnp.minimum(c * bpc + i, last), 0)

    partials = pl.pallas_call(
        kernel,
        out_shape=jax.ShapeDtypeStruct((chunks * 4, SUBLANES, LANES),
                                       jnp.float32),
        grid_spec=pltpu.PrefetchScalarGridSpec(
            num_scalar_prefetch=0,
            grid=(chunks, bpc),
            in_specs=[
                pl.BlockSpec((br, 2 * LANES), data_map),
                pl.BlockSpec((br, LANES), data_map),
                pl.BlockSpec((2 * LANES, LANES), lambda c, i: (0, 0)),
            ],
            out_specs=pl.BlockSpec((4, SUBLANES, LANES),
                                   lambda c, i: (c, 0, 0)),
        ),
        compiler_params=pltpu.CompilerParams(
            dimension_semantics=("parallel", "arbitrary")),
    )(pred2, true2, w)

    sums = jnp.sum(partials.reshape(chunks, 4, SUBLANES, LANES), axis=(0, 2, 3))
    sum_fe, sum_tn, s00, s11 = sums[0], sums[1], sums[2], sums[3]
    sum_tp = jnp.float32(n) - sum_tn                 # every valid sample is 0/1
    s01 = sum_tn - s00                               # Σ (1-t)·p1  (p0+p1 == 1)
    s10 = sum_tp - s11                               # Σ t·p0

    focal = sum_fe / n
    mti_0 = (s00 + eps) / (s00 + delta_t * s10 + (1.0 - delta_t) * s01 + eps)
    mti_1 = (s11 + eps) / (s11 + (1.0 - delta_t) * s01 + delta_t * s10 + eps)
    tversky = 1.0 - mti_0 + jnp.power(1.0 - mti_1, 1.0 - gamma_t)

    return 100.0 * (focal * weight + tversky * (1.0 - weight))


def asym_unified_focal_loss_pallas(pred, true, weight=0.999, delta_focal=0.6,
                                   gamma_focal=0.5, delta_tversky=0.5,
                                   gamma_tversky=1.0, eps=1e-7):
    """pred: (N, 2) float32 logits; true: (N,) int labels in {0,1}."""
    return _asym_unified_focal_loss(pred, true, float(weight),
                                    float(delta_focal), float(gamma_focal),
                                    float(delta_tversky), float(gamma_tversky),
                                    float(eps))


class FocalLoss:
    """JAX/Pallas port of the PyTorch FocalLoss module."""

    def __init__(self, assymetric=False, weight=1, delta_focal=0.5,
                 gamma_focal=1, delta_tversky=0.5, gamma_tversky=1):
        self.assymetric = assymetric
        self.weight = weight
        self.delta_focal = delta_focal
        self.gamma_focal = gamma_focal
        self.delta_tversky = delta_tversky
        self.gamma_tversky = gamma_tversky

    def __call__(self, pred, true):
        if self.assymetric:
            # softmax(dim=1) is fused into the kernel (computed from logits).
            return asym_unified_focal_loss_pallas(
                pred, true, self.weight, self.delta_focal, self.gamma_focal,
                self.delta_tversky, self.gamma_tversky)
        raise NotImplementedError  # matches the PyTorch module


def _reference_loss(pred, true, weight, delta_f, gamma_f, delta_t, gamma_t,
                    eps=1e-7):
    """Pure-JAX replica of the PyTorch reference for a sanity check."""
    p = jax.nn.softmax(pred.astype(jnp.float32), axis=1)
    pc = jnp.clip(p, eps, 1.0 - eps)
    onehot = jax.nn.one_hot(true, 2, dtype=jnp.float32)
    ce = -onehot * jnp.log(pc)
    back = (1.0 - delta_f) * jnp.power(1.0 - pc[:, 0], gamma_f) * ce[:, 0]
    fore = delta_f * ce[:, 1]
    focal = jnp.mean(back + fore)

    t = true.astype(jnp.float32)
    tn = 1.0 - t
    s00 = jnp.sum(tn * p[:, 0])
    s01 = jnp.sum(tn * p[:, 1])
    s10 = jnp.sum(t * p[:, 0])
    s11 = jnp.sum(t * p[:, 1])
    mti_0 = (s00 + eps) / (s00 + delta_t * s10 + (1.0 - delta_t) * s01 + eps)
    mti_1 = (s11 + eps) / (s11 + (1.0 - delta_t) * s01 + delta_t * s10 + eps)
    tversky = 1.0 - mti_0 + jnp.power(1.0 - mti_1, 1.0 - gamma_t)
    return 100.0 * (focal * weight + tversky * (1.0 - weight))


if __name__ == "__main__":
    key = jax.random.PRNGKey(0)
    k1, k2 = jax.random.split(key)

    n = 777  # not a multiple of 128 — exercises the in-kernel tail mask
    pred = jax.random.normal(k1, (n, 2), dtype=jnp.float32)        # logits
    true = jax.random.bernoulli(k2, 0.3, (n,)).astype(jnp.int32)   # {0,1} labels

    loss_mod = FocalLoss(assymetric=True, weight=0.999, delta_focal=0.6,
                         gamma_focal=0.5, delta_tversky=0.5, gamma_tversky=1)

    out = jax.block_until_ready(loss_mod(pred, true))
    ref = jax.block_until_ready(
        _reference_loss(pred, true, 0.999, 0.6, 0.5, 0.5, 1.0))

    assert jnp.isfinite(out), "kernel produced non-finite loss"
    assert abs(float(out) - float(ref)) < 2e-3 * max(1.0, abs(float(ref))), (
        f"mismatch: pallas={float(out)} ref={float(ref)}")

    print("KERNEL_OK")
</pallas_src>

<mosaic_0001>
module attributes {stable_mosaic.version = 11 : i64} {
  func.func @_focal_sums_kernel(%arg0: i32, %arg1: i32, %arg2: memref<8x256xf32, #tpu.memory_space<vmem>>, %arg3: memref<8x128xi32, #tpu.memory_space<vmem>>, %arg4: memref<256x128xf32, #tpu.memory_space<vmem>>, %arg5: memref<4x8x128xf32, #tpu.memory_space<vmem>>) attributes {dimension_semantics = [#tpu.dimension_semantics<parallel>, #tpu.dimension_semantics<arbitrary>], iteration_bounds = array<i64: 1, 1>, scalar_prefetch = 0 : i64, scratch_operands = 0 : i64, tpu.core_type = #tpu.core_type<tc>, window_params = [{transform_indices = @transform_0, window_bounds = array<i64: 8, 256>}, {transform_indices = @transform_1, window_bounds = array<i64: 8, 128>}, {pipeline_mode = #tpu.pipeline_mode<synchronous>, transform_indices = @transform_2, window_bounds = array<i64: 256, 128>}, {transform_indices = @transform_3, window_bounds = array<i64: 4, 8, 128>}]} {
    %c0_i32 = arith.constant 0 : i32
    %0 = arith.cmpi eq, %arg1, %c0_i32 : i32
    %1 = arith.extui %0 : i1 to i32
    %c0_i32_0 = arith.constant 0 : i32
    %2 = arith.cmpi ne, %1, %c0_i32_0 : i32
    scf.if %2 {
      %cst_9 = arith.constant 0.000000e+00 : f32
      %18 = vector.broadcast %cst_9 : f32 to vector<4x8x128xf32>
      %c0_10 = arith.constant 0 : index
      %c0_11 = arith.constant 0 : index
      %c0_12 = arith.constant 0 : index
      %19 = vector.load %arg5[%c0_10, %c0_11, %c0_12] : memref<4x8x128xf32, #tpu.memory_space<vmem>>, vector<4x8x128xf32>
      tpu.vector_store %arg5[%c0_10, %c0_11, %c0_12], %18 {strides = array<i32>} : memref<4x8x128xf32, #tpu.memory_space<vmem>>, vector<4x8x128xf32>,
    } else {
    }
    %c0 = arith.constant 0 : index
    %c0_1 = arith.constant 0 : index
    %3 = vector.load %arg2[%c0, %c0_1] : memref<8x256xf32, #tpu.memory_space<vmem>>, vector<8x256xf32>
    %c0_2 = arith.constant 0 : index
    %c0_3 = arith.constant 0 : index
    %4 = vector.load %arg4[%c0_2, %c0_3] : memref<256x128xf32, #tpu.memory_space<vmem>>, vector<256x128xf32>
    %cst = arith.constant dense<0.000000e+00> : vector<8x128xf32>
    %5 = tpu.matmul %3, %4, %cst {dimension_numbers = #tpu.dot_dimension_numbers<[1], [0], [0], [1], [0, 0, 1, 1], [], []>} : vector<8x256xf32>, vector<256x128xf32>, vector<8x128xf32> -> vector<8x128xf32>
    %c0_4 = arith.constant 0 : index
    %c0_5 = arith.constant 0 : index
    %6 = vector.load %arg3[%c0_4, %c0_5] : memref<8x128xi32, #tpu.memory_space<vmem>>, vector<8x128xi32>
    %c1_i32 = arith.constant 1 : i32
    %7 = arith.muli %arg0, %c1_i32 : i32
    %8 = arith.addi %7, %arg1 : i32
    %c8_i32 = arith.constant 8 : i32
    %9 = arith.muli %8, %c8_i32 : i32
    %c8_i32_6 = arith.constant 8 : i32
    %10 = arith.addi %9, %c8_i32_6 : i32
    %c128_i32 = arith.constant 128 : i32
    %11 = arith.muli %10, %c128_i32 : i32
    %c777_i32 = arith.constant 777 : i32
    %12 = arith.cmpi sle, %11, %c777_i32 : i32
    %13 = arith.extui %12 : i1 to i32
    %c0_i32_7 = arith.constant 0 : i32
    %14 = arith.cmpi ne, %13, %c0_i32_7 : i32
    scf.if %14 {
      %c0_i32_9 = arith.constant 0 : i32
      %18 = vector.broadcast %c0_i32_9 : i32 to vector<8x128xi32>
      %19 = arith.cmpi ne, %6, %18 : vector<8x128xi32>
      %20 = arith.extui %19 : vector<8x128xi1> to vector<8x128xi32>
      %21 = arith.sitofp %20 : vector<8x128xi32> to vector<8x128xf32>
      %cst_10 = arith.constant 1.000000e+00 : f32
      %22 = vector.broadcast %cst_10 : f32 to vector<8x128xf32>
      %23 = arith.subf %22, %21 : vector<8x128xf32>
      %24 = math.absf %5 : vector<8x128xf32>
      %cst_11 = arith.constant 0.000000e+00 : f32
      %25 = vector.broadcast %cst_11 : f32 to vector<8x128xf32>
      %26 = arith.subf %25, %24 : vector<8x128xf32>
      %27 = math.exp %26 : vector<8x128xf32>
      %cst_12 = arith.constant 1.000000e+00 : f32
      %28 = vector.broadcast %cst_12 : f32 to vector<8x128xf32>
      %29 = arith.addf %28, %27 : vector<8x128xf32>
      %30 = tpu.reciprocal %29 {approx = true} : vector<8x128xf32> -> vector<8x128xf32>
      %31 = arith.mulf %29, %30 : vector<8x128xf32>
      %cst_13 = arith.constant 2.000000e+00 : f32
      %32 = vector.broadcast %cst_13 : f32 to vector<8x128xf32>
      %33 = arith.subf %32, %31 : vector<8x128xf32>
      %34 = arith.mulf %30, %33 : vector<8x128xf32>
      %35 = arith.mulf %27, %34 : vector<8x128xf32>
      %cst_14 = arith.constant 0.000000e+00 : f32
      %36 = vector.broadcast %cst_14 : f32 to vector<8x128xf32>
      %37 = arith.cmpf oge, %5, %36 : vector<8x128xf32>
      %38 = arith.select %37, %35, %34 : vector<8x128xi1>, vector<8x128xf32>
      %cst_15 = arith.constant 1.000000e+00 : f32
      %39 = vector.broadcast %cst_15 : f32 to vector<8x128xf32>
      %40 = arith.subf %39, %38 : vector<8x128xf32>
      %cst_16 = arith.constant 5.000000e-01 : f32
      %41 = vector.broadcast %cst_16 : f32 to vector<8x128xf32>
      %42 = arith.cmpf ogt, %21, %41 : vector<8x128xf32>
      %43 = arith.select %42, %40, %38 : vector<8x128xi1>, vector<8x128xf32>
      %cst_17 = arith.constant 1.000000e-07 : f32
      %cst_18 = arith.constant 0.99999988 : f32
      %44 = vector.broadcast %cst_17 : f32 to vector<8x128xf32>
      %45 = arith.maximumf %44, %43 : vector<8x128xf32>
      %46 = vector.broadcast %cst_18 : f32 to vector<8x128xf32>
      %47 = arith.minimumf %46, %45 : vector<8x128xf32>
      %cst_19 = arith.constant 1.000000e+00 : f32
      %48 = vector.broadcast %cst_19 : f32 to vector<8x128xf32>
      %49 = arith.subf %48, %47 : vector<8x128xf32>
      %50 = math.sqrt %49 : vector<8x128xf32>
      %cst_20 = arith.constant 6.000000e-01 : f32
      %51 = vector.broadcast %cst_20 : f32 to vector<8x128xf32>
      %52 = arith.mulf %51, %21 : vector<8x128xf32>
      %53 = arith.mulf %50, %23 : vector<8x128xf32>
      %cst_21 = arith.constant 4.000000e-01 : f32
      %54 = vector.broadcast %cst_21 : f32 to vector<8x128xf32>
      %55 = arith.mulf %54, %53 : vector<8x128xf32>
      %56 = arith.addf %52, %55 : vector<8x128xf32>
      %57 = math.log %47 : vector<8x128xf32>
      %cst_22 = arith.constant 0.000000e+00 : f32
      %58 = vector.broadcast %cst_22 : f32 to vector<8x128xf32>
      %59 = arith.subf %58, %57 : vector<8x128xf32>
      %60 = arith.mulf %56, %59 : vector<8x128xf32>
      %c0_23 = arith.constant 0 : index
      %c0_24 = arith.constant 0 : index
      %c0_25 = arith.constant 0 : index
      %61 = vector.load %arg5[%c0_23, %c0_24, %c0_25] : memref<4x8x128xf32, #tpu.memory_space<vmem>>, vector<1x8x128xf32>
      %62 = vector.shape_cast %61 : vector<1x8x128xf32> to vector<8x128xf32>
      %63 = vector.shape_cast %60 : vector<8x128xf32> to vector<1x8x128xf32>
      %cst_26 = arith.constant dense<0.000000e+00> : vector<8x128xf32>
      %64 = vector.multi_reduction <add>, %63, %cst_26 [0] : vector<1x8x128xf32> to vector<8x128xf32>
      %65 = arith.addf %62, %64 : vector<8x128xf32>
      %c0_27 = arith.constant 0 : index
      %c0_28 = arith.constant 0 : index
      %c0_29 = arith.constant 0 : index
      %66 = vector.load %arg5[%c0_27, %c0_28, %c0_29] : memref<4x8x128xf32, #tpu.memory_space<vmem>>, vector<1x8x128xf32>
      %67 = vector.shape_cast %66 : vector<1x8x128xf32> to vector<8x128xf32>
      %68 = vector.shape_cast %65 : vector<8x128xf32> to vector<1x8x128xf32>
      tpu.vector_store %arg5[%c0_27, %c0_28, %c0_29], %68 {strides = array<i32>} : memref<4x8x128xf32, #tpu.memory_space<vmem>>, vector<1x8x128xf32>,
      %c1 = arith.constant 1 : index
      %c0_30 = arith.constant 0 : index
      %c0_31 = arith.constant 0 : index
      %69 = vector.load %arg5[%c1, %c0_30, %c0_31] : memref<4x8x128xf32, #tpu.memory_space<vmem>>, vector<1x8x128xf32>
      %70 = vector.shape_cast %69 : vector<1x8x128xf32> to vector<8x128xf32>
      %71 = vector.shape_cast %23 : vector<8x128xf32> to vector<1x8x128xf32>
      %cst_32 = arith.constant dense<0.000000e+00> : vector<8x128xf32>
      %72 = vector.multi_reduction <add>, %71, %cst_32 [0] : vector<1x8x128xf32> to vector<8x128xf32>
      %73 = arith.addf %70, %72 : vector<8x128xf32>
      %c1_33 = arith.constant 1 : index
      %c0_34 = arith.constant 0 : index
      %c0_35 = arith.constant 0 : index
      %74 = vector.load %arg5[%c1_33, %c0_34, %c0_35] : memref<4x8x128xf32, #tpu.memory_space<vmem>>, vector<1x8x128xf32>
      %75 = vector.shape_cast %74 : vector<1x8x128xf32> to vector<8x128xf32>
      %76 = vector.shape_cast %73 : vector<8x128xf32> to vector<1x8x128xf32>
      tpu.vector_store %arg5[%c1_33, %c0_34, %c0_35], %76 {strides = array<i32>} : memref<4x8x128xf32, #tpu.memory_space<vmem>>, vector<1x8x128xf32>,
      %c2 = arith.constant 2 : index
      %c0_36 = arith.constant 0 : index
      %c0_37 = arith.constant 0 : index
      %77 = vector.load %arg5[%c2, %c0_36, %c0_37] : memref<4x8x128xf32, #tpu.memory_space<vmem>>, vector<1x8x128xf32>
      %78 = vector.shape_cast %77 : vector<1x8x128xf32> to vector<8x128xf32>
      %79 = arith.mulf %23, %38 : vector<8x128xf32>
      %80 = vector.shape_cast %79 : vector<8x128xf32> to vector<1x8x128xf32>
      %cst_38 = arith.constant dense<0.000000e+00> : vector<8x128xf32>
      %81 = vector.multi_reduction <add>, %80, %cst_38 [0] : vector<1x8x128xf32> to vector<8x128xf32>
      %82 = arith.addf %78, %81 : vector<8x128xf32>
      %c2_39 = arith.constant 2 : index
      %c0_40 = arith.constant 0 : index
      %c0_41 = arith.constant 0 : index
      %83 = vector.load %arg5[%c2_39, %c0_40, %c0_41] : memref<4x8x128xf32, #tpu.memory_space<vmem>>, vector<1x8x128xf32>
      %84 = vector.shape_cast %83 : vector<1x8x128xf32> to vector<8x128xf32>
      %85 = vector.shape_cast %82 : vector<8x128xf32> to vector<1x8x128xf32>
      tpu.vector_store %arg5[%c2_39, %c0_40, %c0_41], %85 {strides = array<i32>} : memref<4x8x128xf32, #tpu.memory_space<vmem>>, vector<1x8x128xf32>,
      %c3 = arith.constant 3 : index
      %c0_42 = arith.constant 0 : index
      %c0_43 = arith.constant 0 : index
      %86 = vector.load %arg5[%c3, %c0_42, %c0_43] : memref<4x8x128xf32, #tpu.memory_space<vmem>>, vector<1x8x128xf32>
      %87 = vector.shape_cast %86 : vector<1x8x128xf32> to vector<8x128xf32>
      %88 = arith.mulf %21, %40 : vector<8x128xf32>
      %89 = vector.shape_cast %88 : vector<8x128xf32> to vector<1x8x128xf32>
      %cst_44 = arith.constant dense<0.000000e+00> : vector<8x128xf32>
      %90 = vector.multi_reduction <add>, %89, %cst_44 [0] : vector<1x8x128xf32> to vector<8x128xf32>
      %91 = arith.addf %87, %90 : vector<8x128xf32>
      %c3_45 = arith.constant 3 : index
      %c0_46 = arith.constant 0 : index
      %c0_47 = arith.constant 0 : index
      %92 = vector.load %arg5[%c3_45, %c0_46, %c0_47] : memref<4x8x128xf32, #tpu.memory_space<vmem>>, vector<1x8x128xf32>
      %93 = vector.shape_cast %92 : vector<1x8x128xf32> to vector<8x128xf32>
      %94 = vector.shape_cast %91 : vector<8x128xf32> to vector<1x8x128xf32>
      tpu.vector_store %arg5[%c3_45, %c0_46, %c0_47], %94 {strides = array<i32>} : memref<4x8x128xf32, #tpu.memory_space<vmem>>, vector<1x8x128xf32>,
    } else {
    }
    %true = arith.constant true
    %15 = arith.xori %12, %true : i1
    %16 = arith.extui %15 : i1 to i32
    %c0_i32_8 = arith.constant 0 : i32
    %17 = arith.cmpi ne, %16, %c0_i32_8 : i32
    scf.if %17 {
      %18 = tpu.iota {dimensions = array<i32: 0>} : vector<8x128xi32>
      %19 = tpu.iota {dimensions = array<i32: 1>} : vector<8x128xi32>
      %20 = vector.broadcast %9 : i32 to vector<8x128xi32>
      %21 = arith.addi %20, %18 : vector<8x128xi32>
      %c128_i32_9 = arith.constant 128 : i32
      %22 = vector.broadcast %c128_i32_9 : i32 to vector<8x128xi32>
      %23 = arith.muli %21, %22 : vector<8x128xi32>
      %24 = arith.addi %23, %19 : vector<8x128xi32>
      %c777_i32_10 = arith.constant 777 : i32
      %25 = vector.broadcast %c777_i32_10 : i32 to vector<8x128xi32>
      %26 = arith.cmpi slt, %24, %25 : vector<8x128xi32>
      %c0_i32_11 = arith.constant 0 : i32
      %27 = vector.broadcast %c0_i32_11 : i32 to vector<8x128xi32>
      %28 = arith.cmpi ne, %6, %27 : vector<8x128xi32>
      %29 = arith.andi %26, %28 : vector<8x128xi1>
      %cst_12 = arith.constant 1.000000e+00 : f32
      %cst_13 = arith.constant 0.000000e+00 : f32
      %30 = vector.broadcast %cst_12 : f32 to vector<8x128xf32>
      %31 = vector.broadcast %cst_13 : f32 to vector<8x128xf32>
      %32 = arith.select %29, %30, %31 : vector<8x128xi1>, vector<8x128xf32>
      %c0_i32_14 = arith.constant 0 : i32
      %33 = vector.broadcast %c0_i32_14 : i32 to vector<8x128xi32>
      %34 = arith.cmpi eq, %6, %33 : vector<8x128xi32>
      %35 = arith.andi %26, %34 : vector<8x128xi1>
      %cst_15 = arith.constant 1.000000e+00 : f32
      %cst_16 = arith.constant 0.000000e+00 : f32
      %36 = vector.broadcast %cst_15 : f32 to vector<8x128xf32>
      %37 = vector.broadcast %cst_16 : f32 to vector<8x128xf32>
      %38 = arith.select %35, %36, %37 : vector<8x128xi1>, vector<8x128xf32>
      %cst_17 = arith.constant 0.000000e+00 : f32
      %39 = vector.broadcast %cst_17 : f32 to vector<8x128xf32>
      %40 = arith.select %26, %5, %39 : vector<8x128xi1>, vector<8x128xf32>
      %41 = math.absf %40 : vector<8x128xf32>
      %cst_18 = arith.constant 0.000000e+00 : f32
      %42 = vector.broadcast %cst_18 : f32 to vector<8x128xf32>
      %43 = arith.subf %42, %41 : vector<8x128xf32>
      %44 = math.exp %43 : vector<8x128xf32>
      %cst_19 = arith.constant 1.000000e+00 : f32
      %45 = vector.broadcast %cst_19 : f32 to vector<8x128xf32>
      %46 = arith.addf %45, %44 : vector<8x128xf32>
      %47 = tpu.reciprocal %46 {approx = true} : vector<8x128xf32> -> vector<8x128xf32>
      %48 = arith.mulf %46, %47 : vector<8x128xf32>
      %cst_20 = arith.constant 2.000000e+00 : f32
      %49 = vector.broadcast %cst_20 : f32 to vector<8x128xf32>
      %50 = arith.subf %49, %48 : vector<8x128xf32>
      %51 = arith.mulf %47, %50 : vector<8x128xf32>
      %52 = arith.mulf %44, %51 : vector<8x128xf32>
      %cst_21 = arith.constant 0.000000e+00 : f32
      %53 = vector.broadcast %cst_21 : f32 to vector<8x128xf32>
      %54 = arith.cmpf oge, %40, %53 : vector<8x128xf32>
      %55 = arith.select %54, %52, %51 : vector<8x128xi1>, vector<8x128xf32>
      %cst_22 = arith.constant 1.000000e+00 : f32
      %56 = vector.broadcast %cst_22 : f32 to vector<8x128xf32>
      %57 = arith.subf %56, %55 : vector<8x128xf32>
      %cst_23 = arith.constant 5.000000e-01 : f32
      %58 = vector.broadcast %cst_23 : f32 to vector<8x128xf32>
      %59 = arith.cmpf ogt, %32, %58 : vector<8x128xf32>
      %60 = arith.select %59, %57, %55 : vector<8x128xi1>, vector<8x128xf32>
      %cst_24 = arith.constant 1.000000e-07 : f32
      %cst_25 = arith.constant 0.99999988 : f32
      %61 = vector.broadcast %cst_24 : f32 to vector<8x128xf32>
      %62 = arith.maximumf %61, %60 : vector<8x128xf32>
      %63 = vector.broadcast %cst_25 : f32 to vector<8x128xf32>
      %64 = arith.minimumf %63, %62 : vector<8x128xf32>
      %cst_26 = arith.constant 1.000000e+00 : f32
      %65 = vector.broadcast %cst_26 : f32 to vector<8x128xf32>
      %66 = arith.subf %65, %64 : vector<8x128xf32>
      %67 = math.sqrt %66 : vector<8x128xf32>
      %cst_27 = arith.constant 6.000000e-01 : f32
      %68 = vector.broadcast %cst_27 : f32 to vector<8x128xf32>
      %69 = arith.mulf %68, %32 : vector<8x128xf32>
      %70 = arith.mulf %67, %38 : vector<8x128xf32>
      %cst_28 = arith.constant 4.000000e-01 : f32
      %71 = vector.broadcast %cst_28 : f32 to vector<8x128xf32>
      %72 = arith.mulf %71, %70 : vector<8x128xf32>
      %73 = arith.addf %69, %72 : vector<8x128xf32>
      %74 = math.log %64 : vector<8x128xf32>
      %cst_29 = arith.constant 0.000000e+00 : f32
      %75 = vector.broadcast %cst_29 : f32 to vector<8x128xf32>
      %76 = arith.subf %75, %74 : vector<8x128xf32>
      %77 = arith.mulf %73, %76 : vector<8x128xf32>
      %c0_30 = arith.constant 0 : index
      %c0_31 = arith.constant 0 : index
      %c0_32 = arith.constant 0 : index
      %78 = vector.load %arg5[%c0_30, %c0_31, %c0_32] : memref<4x8x128xf32, #tpu.memory_space<vmem>>, vector<1x8x128xf32>
      %79 = vector.shape_cast %78 : vector<1x8x128xf32> to vector<8x128xf32>
      %80 = vector.shape_cast %77 : vector<8x128xf32> to vector<1x8x128xf32>
      %cst_33 = arith.constant dense<0.000000e+00> : vector<8x128xf32>
      %81 = vector.multi_reduction <add>, %80, %cst_33 [0] : vector<1x8x128xf32> to vector<8x128xf32>
      %82 = arith.addf %79, %81 : vector<8x128xf32>
      %c0_34 = arith.constant 0 : index
      %c0_35 = arith.constant 0 : index
      %c0_36 = arith.constant 0 : index
      %83 = vector.load %arg5[%c0_34, %c0_35, %c0_36] : memref<4x8x128xf32, #tpu.memory_space<vmem>>, vector<1x8x128xf32>
      %84 = vector.shape_cast %83 : vector<1x8x128xf32> to vector<8x128xf32>
      %85 = vector.shape_cast %82 : vector<8x128xf32> to vector<1x8x128xf32>
      tpu.vector_store %arg5[%c0_34, %c0_35, %c0_36], %85 {strides = array<i32>} : memref<4x8x128xf32, #tpu.memory_space<vmem>>, vector<1x8x128xf32>,
      %c1 = arith.constant 1 : index
      %c0_37 = arith.constant 0 : index
      %c0_38 = arith.constant 0 : index
      %86 = vector.load %arg5[%c1, %c0_37, %c0_38] : memref<4x8x128xf32, #tpu.memory_space<vmem>>, vector<1x8x128xf32>
      %87 = vector.shape_cast %86 : vector<1x8x128xf32> to vector<8x128xf32>
      %88 = vector.shape_cast %38 : vector<8x128xf32> to vector<1x8x128xf32>
      %cst_39 = arith.constant dense<0.000000e+00> : vector<8x128xf32>
      %89 = vector.multi_reduction <add>, %88, %cst_39 [0] : vector<1x8x128xf32> to vector<8x128xf32>
      %90 = arith.addf %87, %89 : vector<8x128xf32>
      %c1_40 = arith.constant 1 : index
      %c0_41 = arith.constant 0 : index
      %c0_42 = arith.constant 0 : index
      %91 = vector.load %arg5[%c1_40, %c0_41, %c0_42] : memref<4x8x128xf32, #tpu.memory_space<vmem>>, vector<1x8x128xf32>
      %92 = vector.shape_cast %91 : vector<1x8x128xf32> to vector<8x128xf32>
      %93 = vector.shape_cast %90 : vector<8x128xf32> to vector<1x8x128xf32>
      tpu.vector_store %arg5[%c1_40, %c0_41, %c0_42], %93 {strides = array<i32>} : memref<4x8x128xf32, #tpu.memory_space<vmem>>, vector<1x8x128xf32>,
      %c2 = arith.constant 2 : index
      %c0_43 = arith.constant 0 : index
      %c0_44 = arith.constant 0 : index
      %94 = vector.load %arg5[%c2, %c0_43, %c0_44] : memref<4x8x128xf32, #tpu.memory_space<vmem>>, vector<1x8x128xf32>
      %95 = vector.shape_cast %94 : vector<1x8x128xf32> to vector<8x128xf32>
      %96 = arith.mulf %38, %55 : vector<8x128xf32>
      %97 = vector.shape_cast %96 : vector<8x128xf32> to vector<1x8x128xf32>
      %cst_45 = arith.constant dense<0.000000e+00> : vector<8x128xf32>
      %98 = vector.multi_reduction <add>, %97, %cst_45 [0] : vector<1x8x128xf32> to vector<8x128xf32>
      %99 = arith.addf %95, %98 : vector<8x128xf32>
      %c2_46 = arith.constant 2 : index
      %c0_47 = arith.constant 0 : index
      %c0_48 = arith.constant 0 : index
      %100 = vector.load %arg5[%c2_46, %c0_47, %c0_48] : memref<4x8x128xf32, #tpu.memory_space<vmem>>, vector<1x8x128xf32>
      %101 = vector.shape_cast %100 : vector<1x8x128xf32> to vector<8x128xf32>
      %102 = vector.shape_cast %99 : vector<8x128xf32> to vector<1x8x128xf32>
      tpu.vector_store %arg5[%c2_46, %c0_47, %c0_48], %102 {strides = array<i32>} : memref<4x8x128xf32, #tpu.memory_space<vmem>>, vector<1x8x128xf32>,
      %c3 = arith.constant 3 : index
      %c0_49 = arith.constant 0 : index
      %c0_50 = arith.constant 0 : index
      %103 = vector.load %arg5[%c3, %c0_49, %c0_50] : memref<4x8x128xf32, #tpu.memory_space<vmem>>, vector<1x8x128xf32>
      %104 = vector.shape_cast %103 : vector<1x8x128xf32> to vector<8x128xf32>
      %105 = arith.mulf %32, %57 : vector<8x128xf32>
      %106 = vector.shape_cast %105 : vector<8x128xf32> to vector<1x8x128xf32>
      %cst_51 = arith.constant dense<0.000000e+00> : vector<8x128xf32>
      %107 = vector.multi_reduction <add>, %106, %cst_51 [0] : vector<1x8x128xf32> to vector<8x128xf32>
      %108 = arith.addf %104, %107 : vector<8x128xf32>
      %c3_52 = arith.constant 3 : index
      %c0_53 = arith.constant 0 : index
      %c0_54 = arith.constant 0 : index
      %109 = vector.load %arg5[%c3_52, %c0_53, %c0_54] : memref<4x8x128xf32, #tpu.memory_space<vmem>>, vector<1x8x128xf32>
      %110 = vector.shape_cast %109 : vector<1x8x128xf32> to vector<8x128xf32>
      %111 = vector.shape_cast %108 : vector<8x128xf32> to vector<1x8x128xf32>
      tpu.vector_store %arg5[%c3_52, %c0_53, %c0_54], %111 {strides = array<i32>} : memref<4x8x128xf32, #tpu.memory_space<vmem>>, vector<1x8x128xf32>,
    } else {
    }
    return
  }
  func.func @transform_0(%arg0: i32, %arg1: i32) -> (i32, i32) {
    %c1_i32 = arith.constant 1 : i32
    %0 = arith.muli %arg0, %c1_i32 : i32
    %1 = arith.addi %0, %arg1 : i32
    %c0_i32 = arith.constant 0 : i32
    %2 = arith.minsi %1, %c0_i32 : i32
    %c0_i32_0 = arith.constant 0 : i32
    %c0_i32_1 = arith.constant 0 : i32
    return %2, %c0_i32_0 : i32, i32
  }
  func.func @transform_1(%arg0: i32, %arg1: i32) -> (i32, i32) {
    %c1_i32 = arith.constant 1 : i32
    %0 = arith.muli %arg0, %c1_i32 : i32
    %1 = arith.addi %0, %arg1 : i32
    %c0_i32 = arith.constant 0 : i32
    %2 = arith.minsi %1, %c0_i32 : i32
    %c0_i32_0 = arith.constant 0 : i32
    %c0_i32_1 = arith.constant 0 : i32
    return %2, %c0_i32_0 : i32, i32
  }
  func.func @transform_2(%arg0: i32, %arg1: i32) -> (i32, i32) {
    %c0_i32 = arith.constant 0 : i32
    %c0_i32_0 = arith.constant 0 : i32
    %c0_i32_1 = arith.constant 0 : i32
    return %c0_i32, %c0_i32_0 : i32, i32
  }
  func.func @transform_3(%arg0: i32, %arg1: i32) -> (i32, i32, i32) {
    %c0_i32 = arith.constant 0 : i32
    %c0_i32_0 = arith.constant 0 : i32
    %c0_i32_1 = arith.constant 0 : i32
    return %arg0, %c0_i32, %c0_i32_0 : i32, i32, i32
  }
}

</mosaic_0001>

<llo_original>
// kernel: _asym_unified_focal_loss.1
$region0: #{_asym_unified_focal_loss.1}
  #allocation0 [shape = 'u32[]', space=smem, size = 0x4, offset = 0x4, fixed_abs, tag = 'smem constant byte address 0x4 - core index']
  #allocation1 [shape = 'u32[144,128]{1,0:T(1,128)}', space=vmem, size = 0x12000, scoped, tag = 'internal scratch']
  %s0 = inlined_call_operand.vmem [shape: f32[8,256], index: 0, kind: input, shape index: {}]
  %s1 = inlined_call_operand.vmem [shape: s32[8,128], index: 1, kind: input, shape index: {}]
  %s2 = inlined_call_operand.vmem [shape: f32[256,128], index: 2, kind: input, shape index: {}]
  %s3 = inlined_call_operand.vmem [shape: f32[4,8,128], index: 3, kind: output, shape index: {}]
  %s4 = sld [smem:[#allocation0]]
  $region34: #{_asym_unified_focal_loss.1} parent=0
    _
  %s6 = ssub.s32 1, %s4
  %s7 = scalar_select 0, %s6, %s4
  // Predicated region
  $region2: #{_asym_unified_focal_loss.1} parent=0 // pred_check
    _
  $region3: #{_asym_unified_focal_loss.1} parent=0 // pred_check_branch
    %9 = sbr.rel (0) target = $region5
  $region4: #{_asym_unified_focal_loss.1} parent=0 // pred_region
    %s10 = sadd.s32 0, 0
    %p11 = scmp.lt.s32.totalorder %s10, 0
    %s12 = scalar_select %p11, %s10, 0
    %p13 = scmp.lt.s32.totalorder %s12, 0
    %s14 = scalar_select %p13, %s12, 0
    %s15 = smul.addr %s14, 2
    %s16 = smul.addr %s15, 8
    %s17 = scalar_lea.vmem %s0, %s16
    %s18 = sadd.s32 0, 0
    %p19 = scmp.lt.s32.totalorder %s18, 0
    %s20 = scalar_select %p19, %s18, 0
  $region5: #{_asym_unified_focal_loss.1} parent=0 // pred_fallthru
    _
  // Predicated region
  $region6: #{_asym_unified_focal_loss.1} parent=0 // pred_check
    _
  $region7: #{_asym_unified_focal_loss.1} parent=0 // pred_check_branch
    %22 = sbr.rel (0) target = $region9
  $region8: #{_asym_unified_focal_loss.1} parent=0 // pred_region
    %s23 = sadd.s32 0, 0
    %p24 = scmp.lt.s32.totalorder %s23, 0
    %s25 = scalar_select %p24, %s23, 0
    %p26 = scmp.lt.s32.totalorder %s25, 0
    %s27 = scalar_select %p26, %s25, 0
    %s28 = smul.addr %s27, 8
    %s29 = scalar_lea.vmem %s1, %s28
    %s30 = sadd.s32 0, 0
    %p31 = scmp.lt.s32.totalorder %s30, 0
    %s32 = scalar_select %p31, %s30, 0
  $region9: #{_asym_unified_focal_loss.1} parent=0 // pred_fallthru
    _
  // Predicated region
  $region10: #{_asym_unified_focal_loss.1} parent=0 // pred_check
    _
  $region11: #{_asym_unified_focal_loss.1} parent=0 // pred_check_branch
    %34 = sbr.rel (0) target = $region13
  $region12: #{_asym_unified_focal_loss.1} parent=0 // pred_region
    _
  $region13: #{_asym_unified_focal_loss.1} parent=0 // pred_fallthru
    _
  %s35 = sadd.s32 0, 0
  %p36 = scmp.lt.s32.totalorder %s35, 0
  %s37 = scalar_select %p36, %s35, 0
  %p38 = scmp.lt.s32.totalorder %s37, 0
  %s39 = scalar_select %p38, %s37, 0
  %s40 = smul.addr %s39, 2
  %s41 = smul.addr %s40, 8
  %s42 = scalar_lea.vmem %s0, %s41
  %s43 = sadd.s32 0, 0
  %p44 = scmp.lt.s32.totalorder %s43, 0
  %s45 = scalar_select %p44, %s43, 0
  %p46 = scmp.lt.s32.totalorder %s45, 0
  %s47 = scalar_select %p46, %s45, 0
  %s48 = smul.addr %s47, 8
  %s49 = scalar_lea.vmem %s1, %s48
  %s50 = sadd.s32 0, 0
  %p51 = scmp.lt.s32.totalorder %s50, 0
  %s52 = scalar_select %p51, %s50, 0
  %p53 = scmp.lt.s32.totalorder %s52, 0
  %s54 = scalar_select %p53, %s52, 0
  %s55 = smul.addr %s54, 2
  %s56 = smul.addr %s55, 8
  %s57 = scalar_lea.vmem %s0, %s56
  %s58 = sadd.s32 0, 0
  %p59 = scmp.lt.s32.totalorder %s58, 0
  %s60 = scalar_select %p59, %s58, 0
  %s61 = sadd.s32 0, 0
  %p62 = scmp.lt.s32.totalorder %s61, 0
  %s63 = scalar_select %p62, %s61, 0
  %p64 = scmp.lt.s32.totalorder %s63, 0
  %s65 = scalar_select %p64, %s63, 0
  %s66 = smul.addr %s65, 8
  %s67 = scalar_lea.vmem %s1, %s66
  %s68 = sadd.s32 0, 0
  %p69 = scmp.lt.s32.totalorder %s68, 0
  %s70 = scalar_select %p69, %s68, 0
  %p71 = scmp.eq.s32.totalorder 0, 0
  // Predicated region
  $region14: #{_asym_unified_focal_loss.1} parent=0 // pred_check
    %p72 = pneg %p71
  $region15: #{_asym_unified_focal_loss.1} parent=0 // pred_check_branch
    %74 = sbr.rel (%p72) target = $region17
  $region16: #{_asym_unified_focal_loss.1} parent=0 // pred_region
    %75 = vst [vmem:[%s3] sm:$0xff] 0.0
    %76 = vst [vmem:[%s3 + $0x8] sm:$0xff] 0.0
    %77 = vst [vmem:[%s3 + $0x10] sm:$0xff] 0.0
    %78 = vst [vmem:[%s3 + $0x18] sm:$0xff] 0.0
  $region17: #{_asym_unified_focal_loss.1} parent=0 // pred_fallthru
    _
  %v79 = vld [vmem:[%s57] sm:$0xff]
  %v80 = vld [vmem:[%s57 + $0x8] sm:$0xff]
  %v81 = vld [vmem:[%s2] sm:$0xff]
  %v82 = vld [vmem:[%s2 + $0x8] sm:$0xff]
  %v83 = vld [vmem:[%s2 + $0x10] sm:$0xff]
  %v84 = vld [vmem:[%s2 + $0x18] sm:$0xff]
  %v85 = vld [vmem:[%s2 + $0x20] sm:$0xff]
  %v86 = vld [vmem:[%s2 + $0x28] sm:$0xff]
  %v87 = vld [vmem:[%s2 + $0x30] sm:$0xff]
  %v88 = vld [vmem:[%s2 + $0x38] sm:$0xff]
  %v89 = vld [vmem:[%s2 + $0x40] sm:$0xff]
  %v90 = vld [vmem:[%s2 + $0x48] sm:$0xff]
  %v91 = vld [vmem:[%s2 + $0x50] sm:$0xff]
  %v92 = vld [vmem:[%s2 + $0x58] sm:$0xff]
  %v93 = vld [vmem:[%s2 + $0x60] sm:$0xff]
  %v94 = vld [vmem:[%s2 + $0x68] sm:$0xff]
  %v95 = vld [vmem:[%s2 + $0x70] sm:$0xff]
  %v96 = vld [vmem:[%s2 + $0x78] sm:$0xff]
  %v97 = vld [vmem:[%s2 + $0x80] sm:$0xff]
  %v98 = vld [vmem:[%s2 + $0x88] sm:$0xff]
  %v99 = vld [vmem:[%s2 + $0x90] sm:$0xff]
  %v100 = vld [vmem:[%s2 + $0x98] sm:$0xff]
  %v101 = vld [vmem:[%s2 + $0xa0] sm:$0xff]
  %v102 = vld [vmem:[%s2 + $0xa8] sm:$0xff]
  %v103 = vld [vmem:[%s2 + $0xb0] sm:$0xff]
  %v104 = vld [vmem:[%s2 + $0xb8] sm:$0xff]
  %v105 = vld [vmem:[%s2 + $0xc0] sm:$0xff]
  %v106 = vld [vmem:[%s2 + $0xc8] sm:$0xff]
  %v107 = vld [vmem:[%s2 + $0xd0] sm:$0xff]
  %v108 = vld [vmem:[%s2 + $0xd8] sm:$0xff]
  %v109 = vld [vmem:[%s2 + $0xe0] sm:$0xff]
  %v110 = vld [vmem:[%s2 + $0xe8] sm:$0xff]
  %v111 = vld [vmem:[%s2 + $0xf0] sm:$0xff]
  %v112 = vld [vmem:[%s2 + $0xf8] sm:$0xff]
  %113 = vmatprep.subr.mxu0 0.0
  %114 = vmatpush1.msra.mxu0 %v81
  %115 = vmatprep.subr.mxu0 0.0
  %116 = vmatpush1.msra.mxu0 %v82
  %117 = vmatprep.subr.mxu0 0.0
  %118 = vmatpush1.msra.mxu0 %v83
  %119 = vmatprep.subr.mxu0 0.0
  %120 = vmatpush1.msra.mxu0 %v84
  %121 = vmatprep.subr.mxu0 0.0
  %122 = vmatpush1.msra.mxu0 %v85
  %123 = vmatprep.subr.mxu0 0.0
  %124 = vmatpush1.msra.mxu0 %v86
  %125 = vmatprep.subr.mxu0 0.0
  %126 = vmatpush1.msra.mxu0 %v87
  %127 = vmatprep.subr.mxu0 0.0
  %128 = vmatpush1.msra.mxu0 %v88
  %129 = vmatprep.subr.mxu0 0.0
  %130 = vmatpush1.msra.mxu0 %v89
  %131 = vmatprep.subr.mxu0 0.0
  %132 = vmatpush1.msra.mxu0 %v90
  %133 = vmatprep.subr.mxu0 0.0
  %134 = vmatpush1.msra.mxu0 %v91
  %135 = vmatprep.subr.mxu0 0.0
  %136 = vmatpush1.msra.mxu0 %v92
  %137 = vmatprep.subr.mxu0 0.0
  %138 = vmatpush1.msra.mxu0 %v93
  %139 = vmatprep.subr.mxu0 0.0
  %140 = vmatpush1.msra.mxu0 %v94
  %141 = vmatprep.subr.mxu0 0.0
  %142 = vmatpush1.msra.mxu0 %v95
  %143 = vmatprep.subr.mxu0 0.0
  %144 = vmatpush1.msra.mxu0 %v96
  %145 = vmatprep.subr.mxu0 0.0
  %146 = vmatpush1.msra.mxu0 %v97
  %147 = vmatprep.subr.mxu0 0.0
  %148 = vmatpush1.msra.mxu0 %v98
  %149 = vmatprep.subr.mxu0 0.0
  %150 = vmatpush1.msra.mxu0 %v99
  %151 = vmatprep.subr.mxu0 0.0
  %152 = vmatpush1.msra.mxu0 %v100
  %153 = vmatprep.subr.mxu0 0.0
  %154 = vmatpush1.msra.mxu0 %v101
  %155 = vmatprep.subr.mxu0 0.0
  %156 = vmatpush1.msra.mxu0 %v102
  %157 = vmatprep.subr.mxu0 0.0
  %158 = vmatpush1.msra.mxu0 %v103
  %159 = vmatprep.subr.mxu0 0.0
  %160 = vmatpush1.msra.mxu0 %v104
  %161 = vmatprep.subr.mxu0 0.0
  %162 = vmatpush1.msra.mxu0 %v105
  %163 = vmatprep.subr.mxu0 0.0
  %164 = vmatpush1.msra.mxu0 %v106
  %165 = vmatprep.subr.mxu0 0.0
  %166 = vmatpush1.msra.mxu0 %v107
  %167 = vmatprep.subr.mxu0 0.0
  %168 = vmatpush1.msra.mxu0 %v108
  %169 = vmatprep.subr.mxu0 0.0
  %170 = vmatpush1.msra.mxu0 %v109
  %171 = vmatprep.subr.mxu0 0.0
  %172 = vmatpush1.msra.mxu0 %v110
  %173 = vmatprep.subr.mxu0 0.0
  %174 = vmatpush1.msra.mxu0 %v111
  %175 = vmatprep.subr.mxu0 0.0
  %176 = vmatpush1.msra.mxu0 %v112
  %177 = vmatprep.mubr.f32.mxu0 %v80
  %178 = vmatmul.mubr.f32.gmra.mrb[0].mxu0 %v79
  %v179 = vpop.f32.mrb[0].mxu0
  %v180 = vadd.f32 0.0, %v179
  %v181 = vpop.f32.mrb[0].mxu0
  %182 = vdwg.mxu0
  %v183 = vld [vmem:[%s67] sm:$0xff]
  %s184 = sadd.s32 0, 0
  %s185 = smul.u32 %s184, 8
  %s186 = sadd.s32 %s185, 8
  %s187 = smul.u32 %s186, 128
  %p188 = scmp.le.s32.totalorder %s187, 777
  // Predicated region
  $region18: #{_asym_unified_focal_loss.1} parent=0 // pred_check
    %p189 = pneg %p188
  $region19: #{_asym_unified_focal_loss.1} parent=0 // pred_check_branch
    %191 = sbr.rel (%p189) target = $region21
  $region20: #{_asym_unified_focal_loss.1} parent=0 // pred_region
    %vm192 = vcmp.ne.s32.totalorder %v183, 0
    %v193 = vsel %vm192, 1, 0
    %v194 = vcvt.s32.f32 %v193
    %v195 = vsub.f32 1.0, %v194
    %v196 = vand.u32 2147483647, %v180
    %v197 = vsub.f32 0.0, %v196
    %v198 = vmul.f32 %v197, 1.442695
    %v199 = vpow.pop %v198
    %v200 = vadd.f32 %v199, 1.0
    %v201 = vrcp.pop %v200
    %v202 = vmul.f32 %v200, %v201
    %v203 = vsub.f32 2.0, %v202
    %v204 = vmul.f32 %v201, %v203
    %v205 = vmul.f32 %v199, %v204
    %vm206 = vcmp.ge.f32.partialorder %v180, 0.0
    %v207 = vsel %vm206, %v205, %v204
    %v208 = vsub.f32 1.0, %v207
    %vm209 = vcmp.gt.f32.partialorder %v194, 0.5
    %v210 = vsel %vm209, %v208, %v207
    %v211 = vmax.f32 %v210, 1e-07
    %v212 = vmin.f32 %v211, 0.9999999
    %v213 = vsub.f32 1.0, %v212
    %v214 = vrsqrt.pop %v213
    %v215 = vmul.f32 %v213, %v214
    %vm216 = vcmp.eq.f32.partialorder %v213, inf
    %v217 = vsel %vm216, %v213, %v215
    %vm218 = vcmp.eq.f32.partialorder %v213, 0.0
    %v219 = vand.u32 %v213, 2147483648
    %v220 = vsel %vm218, %v219, %v217
    %v221 = vmul.f32 %v194, 0.6
    %v222 = vmul.f32 %v220, %v195
    %v223 = vmul.f32 %v222, 0.4
    %v224 = vadd.f32 %v221, %v223
    %v225 = vlog2.pop %v212
    %v226 = vmul.f32 %v225, 0.6931472
    %v227 = vsub.f32 0.0, %v226
    %v228 = vmul.f32 %v224, %v227
    %v229 = vld [vmem:[%s3] sm:$0xff]
    %v230 = vadd.f32 %v228, 0.0
    %v231 = vadd.f32 %v229, %v230
    %232 = vst [vmem:[%s3] sm:$0xff] %v231
    %s233 = scalar_lea.vmem %s3, 8
    %v234 = vld [vmem:[%s233] sm:$0xff]
    %v235 = vadd.f32 %v195, 0.0
    %v236 = vadd.f32 %v234, %v235
    %237 = vst [vmem:[%s233] sm:$0xff] %v236
    %s238 = scalar_lea.vmem %s3, 16
    %v239 = vld [vmem:[%s238] sm:$0xff]
    %v240 = vmul.f32 %v195, %v207
    %v241 = vadd.f32 %v240, 0.0
    %v242 = vadd.f32 %v239, %v241
    %243 = vst [vmem:[%s238] sm:$0xff] %v242
    %s244 = scalar_lea.vmem %s3, 24
    %v245 = vld [vmem:[%s244] sm:$0xff]
    %v246 = vmul.f32 %v194, %v208
    %v247 = vadd.f32 %v246, 0.0
    %v248 = vadd.f32 %v245, %v247
    %249 = vst [vmem:[%s244] sm:$0xff] %v248
  $region21: #{_asym_unified_focal_loss.1} parent=0 // pred_fallthru
    _
  %p250 = scmp.gt.s32.totalorder %s187, 777
  // Predicated region
  $region22: #{_asym_unified_focal_loss.1} parent=0 // pred_check
    %p251 = pneg %p250
  $region23: #{_asym_unified_focal_loss.1} parent=0 // pred_check_branch
    %253 = sbr.rel (%p251) target = $region25
  $region24: #{_asym_unified_focal_loss.1} parent=0 // pred_region
    %v254 = vlaneseq
    %v255 = vshrl.u32 %v254, 7
    %v256 = vlaneseq
    %v257 = vand.u32 %v256, 127
    %v258 = vstv %s185
    %v259 = vadd.s32 %v258, %v255
    %v260 = vmul.u32 %v259, 128
    %v261 = vadd.s32 %v260, %v257
    %vm262 = vcmp.lt.s32.totalorder %v261, 777
    %vm263 = vcmp.ne.s32.totalorder %v183, 0
    %vm264 = vmand %vm262, %vm263
    %v265 = vsel %vm264, 1.0, 0.0
    %vm266 = vcmp.eq.s32.totalorder %v183, 0
    %vm267 = vmand %vm262, %vm266
    %v268 = vsel %vm267, 1.0, 0.0
    %v269 = vsel %vm262, %v180, 0.0
    %v270 = vand.u32 2147483647, %v269
    %v271 = vsub.f32 0.0, %v270
    %v272 = vmul.f32 %v271, 1.442695
    %v273 = vpow.pop %v272
    %v274 = vadd.f32 %v273, 1.0
    %v275 = vrcp.pop %v274
    %v276 = vmul.f32 %v274, %v275
    %v277 = vsub.f32 2.0, %v276
    %v278 = vmul.f32 %v275, %v277
    %v279 = vmul.f32 %v273, %v278
    %vm280 = vcmp.ge.f32.partialorder %v269, 0.0
    %v281 = vsel %vm280, %v279, %v278
    %v282 = vsub.f32 1.0, %v281
    %vm283 = vcmp.gt.f32.partialorder %v265, 0.5
    %v284 = vsel %vm283, %v282, %v281
    %v285 = vmax.f32 %v284, 1e-07
    %v286 = vmin.f32 %v285, 0.9999999
    %v287 = vsub.f32 1.0, %v286
    %v288 = vrsqrt.pop %v287
    %v289 = vmul.f32 %v287, %v288
    %vm290 = vcmp.eq.f32.partialorder %v287, inf
    %v291 = vsel %vm290, %v287, %v289
    %vm292 = vcmp.eq.f32.partialorder %v287, 0.0
    %v293 = vand.u32 %v287, 2147483648
    %v294 = vsel %vm292, %v293, %v291
    %v295 = vmul.f32 %v265, 0.6
    %v296 = vmul.f32 %v294, %v268
    %v297 = vmul.f32 %v296, 0.4
    %v298 = vadd.f32 %v295, %v297
    %v299 = vlog2.pop %v286
    %v300 = vmul.f32 %v299, 0.6931472
    %v301 = vsub.f32 0.0, %v300
    %v302 = vmul.f32 %v298, %v301
    %v303 = vld [vmem:[%s3] sm:$0xff]
    %v304 = vadd.f32 %v302, 0.0
    %v305 = vadd.f32 %v303, %v304
    %306 = vst [vmem:[%s3] sm:$0xff] %v305
    %s307 = scalar_lea.vmem %s3, 8
    %v308 = vld [vmem:[%s307] sm:$0xff]
    %v309 = vadd.f32 %v268, 0.0
    %v310 = vadd.f32 %v308, %v309
    %311 = vst [vmem:[%s307] sm:$0xff] %v310
    %s312 = scalar_lea.vmem %s3, 16
    %v313 = vld [vmem:[%s312] sm:$0xff]
    %v314 = vmul.f32 %v268, %v281
    %v315 = vadd.f32 %v314, 0.0
    %v316 = vadd.f32 %v313, %v315
    %317 = vst [vmem:[%s312] sm:$0xff] %v316
    %s318 = scalar_lea.vmem %s3, 24
    %v319 = vld [vmem:[%s318] sm:$0xff]
    %v320 = vmul.f32 %v265, %v282
    %v321 = vadd.f32 %v320, 0.0
    %v322 = vadd.f32 %v319, %v321
    %323 = vst [vmem:[%s318] sm:$0xff] %v322
  $region25: #{_asym_unified_focal_loss.1} parent=0 // pred_fallthru
    _
  // Predicated region
  $region26: #{_asym_unified_focal_loss.1} parent=0 // pred_check
    _
  $region27: #{_asym_unified_focal_loss.1} parent=0 // pred_check_branch
    %325 = sbr.rel (0) target = $region29
  $region28: #{_asym_unified_focal_loss.1} parent=0 // pred_region
    _
  $region29: #{_asym_unified_focal_loss.1} parent=0 // pred_fallthru
    _
  // Predicated region
  $region30: #{_asym_unified_focal_loss.1} parent=0 // pred_check
    _
  $region31: #{_asym_unified_focal_loss.1} parent=0 // pred_check_branch
    %327 = sbr.rel (0) target = $region33
  $region32: #{_asym_unified_focal_loss.1} parent=0 // pred_region
    _
  $region33: #{_asym_unified_focal_loss.1} parent=0 // pred_fallthru
    _

</llo_original>
